<compile_context>
chip_gen: v5e
topology: v5e:2x2
jax: 0.10.0
libtpu: 0.0.40
codegen_flags: <defaults>
</compile_context>

<pallas_src>
import math
import functools

import jax
import jax.numpy as jnp
from jax.experimental import pallas as pl

# ---------------- small synthetic Llama config ----------------
B, S = 2, 8                       # batch, seq_len
HIDDEN = 64                       # config.hidden_size
N_HEADS = 4                       # config.num_attention_heads
N_KV_HEADS = 2                    # config.num_key_value_heads
HEAD_DIM = HIDDEN // N_HEADS      # 16
N_REP = N_HEADS // N_KV_HEADS     # repeat_kv groups
INTERMEDIATE = 128                # config.intermediate_size
RMS_EPS = 1e-6
ROPE_BASE = 10000.0
DTYPE = jnp.float32


# ---------------- fused decoder-layer kernel (single invocation, M = B*S rows) ----------------
def _decoder_layer_kernel(
    emb_ref, hid_ref, mask_ref, cos_ref, sin_ref,
    inw_ref, hnw_ref, postw_ref,
    wqkv_ref, wo_ref, wgu_ref, wd_ref,
    o_ref,
    *, eps, n_heads, n_kv_heads, head_dim, inter, batch, seq,
):
    f32 = jnp.float32
    bf16 = jnp.bfloat16
    dq = n_heads * head_dim
    dkv = n_kv_heads * head_dim
    nproj = dq + 2 * dkv
    n_rep = n_heads // n_kv_heads

    hid = hid_ref[...].astype(f32)          # (M, H) -- first residual
    emb = emb_ref[...].astype(f32)          # (M, H)

    def rms(x, w):
        var = jnp.mean(x * x, axis=-1, keepdims=True)
        return (x * jax.lax.rsqrt(var + eps)) * w

    # hidden_norm(hidden) / input_layernorm(input_emb), concat on feature dim.
    en = rms(emb, inw_ref[...].astype(f32))
    hn = rms(hid, hnw_ref[...].astype(f32))
    x = jnp.concatenate([en, hn], axis=-1).astype(bf16)          # (M, 2H)

    # Fused [q | k | v | rot(q) | rot(k) | 0] projection: one MXU pass.
    proj = jnp.dot(x, wqkv_ref[...], preferred_element_type=f32)  # (M, 2*nproj)

    # RoPE + 1/sqrt(head_dim): rotate_half lives in the rot(.) weight columns,
    # the scale lives in the q portion of cos/sin, the v columns see cos=1/sin=0.
    qkv = proj[:, :nproj] * cos_ref[...] + proj[:, nproj:] * sin_ref[...]   # (M, nproj)

    q2 = qkv[:, :dq]                       # (M, dq)
    k2 = qkv[:, dq:dq + dkv]               # (M, dkv)
    v2 = qkv[:, dq + dkv:]                 # (M, dkv)

    # Head-major stacks; GQA repeat_interleave is done by index reuse (h // n_rep).
    qh = jnp.stack(
        [q2[:, h * head_dim:(h + 1) * head_dim] for h in range(n_heads)], axis=0
    ).astype(bf16)                                                   # (nh, M, dh)
    kh = jnp.stack(
        [k2[:, (h // n_rep) * head_dim:(h // n_rep + 1) * head_dim]
         for h in range(n_heads)], axis=0).astype(bf16)              # (nh, M, dh)
    vh = jnp.stack(
        [v2[:, (h // n_rep) * head_dim:(h // n_rep + 1) * head_dim]
         for h in range(n_heads)], axis=0).astype(bf16)              # (nh, M, dh)

    # Batched attention over the head axis; block-diagonal mask folds batch + causality.
    s = jnp.einsum('hmd,hnd->hmn', qh, kh, preferred_element_type=f32)   # (nh, M, M)
    s = s + mask_ref[...][None, :, :]
    s = s - jnp.max(s, axis=-1, keepdims=True)
    p = jnp.exp(s)                                                   # fp32 softmax
    p = p * pl.reciprocal(jnp.sum(p, axis=-1, keepdims=True), approx=True)
    ctx = jnp.einsum('hmn,hnd->hmd', p.astype(bf16), vh,
                     preferred_element_type=f32)                     # (nh, M, dh)
    attn = jnp.concatenate([ctx[h] for h in range(n_heads)], axis=-1)  # (M, H)

    # o_proj + residual
    h1 = hid + jnp.dot(attn.astype(bf16), wo_ref[...], preferred_element_type=f32)

    # post-attention norm + fused gate|up MLP + down_proj + residual
    hn2 = rms(h1, postw_ref[...].astype(f32)).astype(bf16)
    gu = jnp.dot(hn2, wgu_ref[...], preferred_element_type=f32)      # (M, 2I)
    g = gu[:, :inter]
    u = gu[:, inter:]
    act = (g * jax.nn.sigmoid(g)) * u                                # SiLU(g) * u
    h2 = h1 + jnp.dot(act.astype(bf16), wd_ref[...], preferred_element_type=f32)

    # Lane-dense output: (seq, batch*H) = (8, 128) slab, unmasked full-vreg stores.
    o_ref[...] = jnp.concatenate(
        [h2[b * seq:(b + 1) * seq, :] for b in range(batch)], axis=-1
    ).astype(o_ref.dtype)


# ---------------- forward wrapper (per-step path: no weight fusion here) ----------------
def decoder_layer_emb_forward(fused, input_emb, hidden_states, mask, cos_t, sin_t):
    b, s, h = hidden_states.shape
    m = b * s
    kernel = functools.partial(
        _decoder_layer_kernel,
        eps=RMS_EPS, n_heads=N_HEADS, n_kv_heads=N_KV_HEADS,
        head_dim=HEAD_DIM, inter=INTERMEDIATE, batch=b, seq=s,
    )
    # TODO(synk): pass activations (and output) as bf16 at this boundary for
    # production sizes to halve activation DMA bytes; kept f32 here for parity.
    out_slab = pl.pallas_call(
        kernel,
        out_shape=jax.ShapeDtypeStruct((s, b * h), hidden_states.dtype),
    )(
        input_emb.reshape(m, h), hidden_states.reshape(m, h),
        mask, cos_t, sin_t,
        fused["input_norm_w"], fused["hidden_norm_w"], fused["post_norm_w"],
        fused["wqkv_ext"], fused["wo"], fused["wgu"], fused["wd"],
    )
    # (S, B*H) lane-dense slab -> (B, S, H): layout plumbing outside the kernel.
    return out_slab.reshape(s, b, h).transpose(1, 0, 2)


# ---------------- one-time parameter / table preparation ----------------
def fuse_decoder_params(params):
    """One-time weight fusion + bf16 cast (NOT part of the per-step forward)."""
    dh = HEAD_DIM
    half = dh // 2

    def rot_cols(w, n_heads):
        # Column-space rotate_half: (x @ w_rot) == rotate_half(x @ w) per head.
        w3 = w.reshape(w.shape[0], n_heads, dh)
        w3r = jnp.concatenate([-w3[..., half:], w3[..., :half]], axis=-1)
        return w3r.reshape(w.shape)

    wq, wk, wv = params["wq_t"], params["wk_t"], params["wv_t"]
    plain = jnp.concatenate([wq, wk, wv], axis=1)                       # (2H, dq+2dkv)
    rot = jnp.concatenate(
        [rot_cols(wq, N_HEADS), rot_cols(wk, N_KV_HEADS), jnp.zeros_like(wv)],
        axis=1)                                                         # (2H, dq+2dkv)
    return dict(
        wqkv_ext=jnp.concatenate([plain, rot], axis=1).astype(jnp.bfloat16),  # (2H, 2*(dq+2dkv))
        wo=params["wo_t"].astype(jnp.bfloat16),                               # (dq, H)
        wgu=jnp.concatenate([params["wg_t"], params["wu_t"]], axis=1
                            ).astype(jnp.bfloat16),                           # (H, 2I)
        wd=params["wd_t"].astype(jnp.bfloat16),                               # (I, H)
        input_norm_w=params["input_norm_w"].reshape(1, -1),
        hidden_norm_w=params["hidden_norm_w"].reshape(1, -1),
        post_norm_w=params["post_norm_w"].reshape(1, -1),
    )


def rope_tables(seq_len, dim, base=ROPE_BASE, dtype=jnp.float32):
    inv_freq = 1.0 / (base ** (jnp.arange(0, dim, 2, dtype=jnp.float32) / dim))
    t = jnp.arange(seq_len, dtype=jnp.float32)
    freqs = jnp.einsum("i,j->ij", t, inv_freq)
    emb = jnp.concatenate([freqs, freqs], axis=-1)
    return jnp.cos(emb).astype(dtype), jnp.sin(emb).astype(dtype)


def attention_tables(batch, seq):
    """Static per-shape tables (built once): RoPE cos/sin tiled over the
    [q|k|v] projection columns with 1/sqrt(head_dim) folded into the q columns,
    plus the block-diagonal causal mask for the flattened (B*S) attention."""
    cos_s, sin_s = rope_tables(seq, HEAD_DIM)            # (S, dh), position_ids = arange(S)
    cos_m = jnp.tile(cos_s, (batch, 1))                  # (M, dh) -- positions restart per batch
    sin_m = jnp.tile(sin_s, (batch, 1))
    scale = 1.0 / math.sqrt(HEAD_DIM)
    m = batch * seq
    dkv = N_KV_HEADS * HEAD_DIM
    cos_full = jnp.concatenate(
        [jnp.tile(cos_m, (1, N_HEADS)) * scale,          # q columns (score scale folded)
         jnp.tile(cos_m, (1, N_KV_HEADS)),               # k columns
         jnp.ones((m, dkv), jnp.float32)], axis=1)       # v columns pass through untouched
    sin_full = jnp.concatenate(
        [jnp.tile(sin_m, (1, N_HEADS)) * scale,
         jnp.tile(sin_m, (1, N_KV_HEADS)),
         jnp.zeros((m, dkv), jnp.float32)], axis=1)
    rows = jnp.arange(m)
    same_batch = (rows[:, None] // seq) == (rows[None, :] // seq)
    causal = (rows[:, None] % seq) >= (rows[None, :] % seq)
    mask = jnp.where(same_batch & causal, 0.0, -1e9).astype(jnp.float32)
    return cos_full, sin_full, mask


# ---------------- deterministic params / pure-JAX reference ----------------
def init_params(key):
    ks = jax.random.split(key, 10)

    def lin(k, d_in, d_out):
        return jax.random.normal(k, (d_in, d_out), DTYPE) * 0.02

    return dict(
        hidden_norm_w=(1.0 + 0.1 * jax.random.normal(ks[7], (HIDDEN,), DTYPE)),
        input_norm_w=(1.0 + 0.1 * jax.random.normal(ks[8], (HIDDEN,), DTYPE)),
        post_norm_w=(1.0 + 0.1 * jax.random.normal(ks[9], (HIDDEN,), DTYPE)),
        wq_t=lin(ks[0], 2 * HIDDEN, N_HEADS * HEAD_DIM),
        wk_t=lin(ks[1], 2 * HIDDEN, N_KV_HEADS * HEAD_DIM),
        wv_t=lin(ks[2], 2 * HIDDEN, N_KV_HEADS * HEAD_DIM),
        wo_t=lin(ks[3], N_HEADS * HEAD_DIM, HIDDEN),
        wg_t=lin(ks[4], HIDDEN, INTERMEDIATE),
        wu_t=lin(ks[5], HIDDEN, INTERMEDIATE),
        wd_t=lin(ks[6], INTERMEDIATE, HIDDEN),
    )


def reference_forward(params, input_emb, hidden_states, attention_mask, cos, sin):
    def rms(x, w):
        xf = x.astype(jnp.float32)
        var = jnp.mean(xf * xf, axis=-1, keepdims=True)
        return w * (xf * jax.lax.rsqrt(var + RMS_EPS))

    residual = hidden_states
    hn = rms(hidden_states, params["hidden_norm_w"])
    en = rms(input_emb, params["input_norm_w"])
    x = jnp.concatenate([en, hn], axis=-1)
    q = x @ params["wq_t"]
    k = x @ params["wk_t"]
    v = x @ params["wv_t"]
    q = q.reshape(B, S, N_HEADS, HEAD_DIM).transpose(0, 2, 1, 3)
    k = k.reshape(B, S, N_KV_HEADS, HEAD_DIM).transpose(0, 2, 1, 3)
    v = v.reshape(B, S, N_KV_HEADS, HEAD_DIM).transpose(0, 2, 1, 3)

    def rot_half(t):
        h = t.shape[-1] // 2
        return jnp.concatenate([-t[..., h:], t[..., :h]], axis=-1)

    c = cos[None, None]
    s = sin[None, None]
    q = q * c + rot_half(q) * s
    k = k * c + rot_half(k) * s
    k = jnp.repeat(k, N_REP, axis=1)
    v = jnp.repeat(v, N_REP, axis=1)
    scores = (q @ jnp.swapaxes(k, -1, -2)) / math.sqrt(HEAD_DIM) + attention_mask
    p = jax.nn.softmax(scores.astype(jnp.float32), axis=-1)
    attn = (p @ v).transpose(0, 2, 1, 3).reshape(B, S, HIDDEN)
    h = residual + attn @ params["wo_t"]
    residual = h
    hn2 = rms(h, params["post_norm_w"])
    g = hn2 @ params["wg_t"]
    u = hn2 @ params["wu_t"]
    return residual + (g * jax.nn.sigmoid(g) * u) @ params["wd_t"]


if __name__ == "__main__":
    key = jax.random.PRNGKey(0)
    kp, ke, kh = jax.random.split(key, 3)
    params = init_params(kp)

    # One-time prep outside the forward path: fused bf16 weights + static tables.
    fused = fuse_decoder_params(params)
    cos_full, sin_full, mask = attention_tables(B, S)

    input_emb = jax.random.normal(ke, (B, S, HIDDEN), DTYPE)
    hidden_states = jax.random.normal(kh, (B, S, HIDDEN), DTYPE)

    fwd = jax.jit(decoder_layer_emb_forward)
    out = jax.block_until_ready(
        fwd(fused, input_emb, hidden_states, mask, cos_full, sin_full))
    assert out.shape == (B, S, HIDDEN)

    # Pure-JAX reference identical to the PyTorch module
    cos, sin = rope_tables(S, HEAD_DIM)
    causal = jnp.where(jnp.tril(jnp.ones((S, S), dtype=bool)), 0.0, -1e9).astype(DTYPE)
    attention_mask = jnp.broadcast_to(causal[None, None], (B, 1, S, S))
    ref = reference_forward(params, input_emb, hidden_states, attention_mask, cos, sin)
    if not jnp.allclose(out, ref, atol=2e-2, rtol=2e-2):
        raise AssertionError("Pallas output mismatch vs pure-JAX reference")

    print("KERNEL_OK")
</pallas_src>

<mosaic_0001>
module attributes {stable_mosaic.version = 11 : i64} {
  func.func @_decoder_layer_kernel(%arg0: memref<16x64xf32, #tpu.memory_space<vmem>>, %arg1: memref<16x64xf32, #tpu.memory_space<vmem>>, %arg2: memref<16x16xf32, #tpu.memory_space<vmem>>, %arg3: memref<16x128xf32, #tpu.memory_space<vmem>>, %arg4: memref<16x128xf32, #tpu.memory_space<vmem>>, %arg5: memref<1x64xf32, #tpu.memory_space<vmem>>, %arg6: memref<1x64xf32, #tpu.memory_space<vmem>>, %arg7: memref<1x64xf32, #tpu.memory_space<vmem>>, %arg8: memref<128x256xbf16, #tpu.memory_space<vmem>>, %arg9: memref<64x64xbf16, #tpu.memory_space<vmem>>, %arg10: memref<64x256xbf16, #tpu.memory_space<vmem>>, %arg11: memref<128x64xbf16, #tpu.memory_space<vmem>>, %arg12: memref<8x128xf32, #tpu.memory_space<vmem>>) attributes {dimension_semantics = [], scalar_prefetch = 0 : i64, scratch_operands = 0 : i64, tpu.core_type = #tpu.core_type<tc>} {
    %c0 = arith.constant 0 : index
    %c0_0 = arith.constant 0 : index
    %0 = vector.load %arg1[%c0, %c0_0] : memref<16x64xf32, #tpu.memory_space<vmem>>, vector<16x64xf32>
    %c0_1 = arith.constant 0 : index
    %c0_2 = arith.constant 0 : index
    %1 = vector.load %arg0[%c0_1, %c0_2] : memref<16x64xf32, #tpu.memory_space<vmem>>, vector<16x64xf32>
    %c0_3 = arith.constant 0 : index
    %c0_4 = arith.constant 0 : index
    %2 = vector.load %arg5[%c0_3, %c0_4] : memref<1x64xf32, #tpu.memory_space<vmem>>, vector<1x64xf32>
    %3 = arith.mulf %1, %1 : vector<16x64xf32>
    %cst = arith.constant dense<0.000000e+00> : vector<16xf32>
    %4 = vector.multi_reduction <add>, %3, %cst [1] : vector<16x64xf32> to vector<16xf32>
    %5 = vector.shape_cast %4 : vector<16xf32> to vector<16x1xf32>
    %cst_5 = arith.constant 6.400000e+01 : f32
    %6 = vector.broadcast %cst_5 : f32 to vector<16x1xf32>
    %7 = arith.divf %5, %6 : vector<16x1xf32>
    %cst_6 = arith.constant 9.99999997E-7 : f32
    %8 = vector.broadcast %cst_6 : f32 to vector<16x1xf32>
    %9 = arith.addf %7, %8 : vector<16x1xf32>
    %10 = math.rsqrt %9 : vector<16x1xf32>
    %11 = vector.broadcast %10 : vector<16x1xf32> to vector<16x64xf32>
    %12 = arith.mulf %1, %11 : vector<16x64xf32>
    %13 = vector.broadcast %2 : vector<1x64xf32> to vector<16x64xf32>
    %14 = arith.mulf %12, %13 : vector<16x64xf32>
    %c0_7 = arith.constant 0 : index
    %c0_8 = arith.constant 0 : index
    %15 = vector.load %arg6[%c0_7, %c0_8] : memref<1x64xf32, #tpu.memory_space<vmem>>, vector<1x64xf32>
    %16 = arith.mulf %0, %0 : vector<16x64xf32>
    %cst_9 = arith.constant dense<0.000000e+00> : vector<16xf32>
    %17 = vector.multi_reduction <add>, %16, %cst_9 [1] : vector<16x64xf32> to vector<16xf32>
    %18 = vector.shape_cast %17 : vector<16xf32> to vector<16x1xf32>
    %cst_10 = arith.constant 6.400000e+01 : f32
    %19 = vector.broadcast %cst_10 : f32 to vector<16x1xf32>
    %20 = arith.divf %18, %19 : vector<16x1xf32>
    %cst_11 = arith.constant 9.99999997E-7 : f32
    %21 = vector.broadcast %cst_11 : f32 to vector<16x1xf32>
    %22 = arith.addf %20, %21 : vector<16x1xf32>
    %23 = math.rsqrt %22 : vector<16x1xf32>
    %24 = vector.broadcast %23 : vector<16x1xf32> to vector<16x64xf32>
    %25 = arith.mulf %0, %24 : vector<16x64xf32>
    %26 = vector.broadcast %15 : vector<1x64xf32> to vector<16x64xf32>
    %27 = arith.mulf %25, %26 : vector<16x64xf32>
    %28 = tpu.concatenate %14, %27 in 1 : vector<16x64xf32>, vector<16x64xf32> -> vector<16x128xf32>
    %29 = arith.truncf %28 : vector<16x128xf32> to vector<16x128xbf16>
    %c0_12 = arith.constant 0 : index
    %c0_13 = arith.constant 0 : index
    %30 = vector.load %arg8[%c0_12, %c0_13] : memref<128x256xbf16, #tpu.memory_space<vmem>>, vector<128x256xbf16>
    %cst_14 = arith.constant dense<0.000000e+00> : vector<16x256xf32>
    %31 = tpu.matmul %29, %30, %cst_14 {dimension_numbers = #tpu.dot_dimension_numbers<[1], [0], [0], [1], [0, 0, 1, 1], [], []>} : vector<16x128xbf16>, vector<128x256xbf16>, vector<16x256xf32> -> vector<16x256xf32>
    %32 = vector.extract_strided_slice %31 {offsets = [0, 0], sizes = [16, 128], strides = [1, 1]} : vector<16x256xf32> to vector<16x128xf32>
    %c0_15 = arith.constant 0 : index
    %c0_16 = arith.constant 0 : index
    %33 = vector.load %arg3[%c0_15, %c0_16] : memref<16x128xf32, #tpu.memory_space<vmem>>, vector<16x128xf32>
    %34 = arith.mulf %32, %33 : vector<16x128xf32>
    %35 = vector.extract_strided_slice %31 {offsets = [0, 128], sizes = [16, 128], strides = [1, 1]} : vector<16x256xf32> to vector<16x128xf32>
    %c0_17 = arith.constant 0 : index
    %c0_18 = arith.constant 0 : index
    %36 = vector.load %arg4[%c0_17, %c0_18] : memref<16x128xf32, #tpu.memory_space<vmem>>, vector<16x128xf32>
    %37 = arith.mulf %35, %36 : vector<16x128xf32>
    %38 = arith.addf %34, %37 : vector<16x128xf32>
    %39 = vector.extract_strided_slice %38 {offsets = [0, 0], sizes = [16, 64], strides = [1, 1]} : vector<16x128xf32> to vector<16x64xf32>
    %40 = vector.extract_strided_slice %38 {offsets = [0, 64], sizes = [16, 32], strides = [1, 1]} : vector<16x128xf32> to vector<16x32xf32>
    %41 = vector.extract_strided_slice %38 {offsets = [0, 96], sizes = [16, 32], strides = [1, 1]} : vector<16x128xf32> to vector<16x32xf32>
    %42 = vector.extract_strided_slice %39 {offsets = [0, 0], sizes = [16, 16], strides = [1, 1]} : vector<16x64xf32> to vector<16x16xf32>
    %43 = vector.extract_strided_slice %39 {offsets = [0, 16], sizes = [16, 16], strides = [1, 1]} : vector<16x64xf32> to vector<16x16xf32>
    %44 = vector.extract_strided_slice %39 {offsets = [0, 32], sizes = [16, 16], strides = [1, 1]} : vector<16x64xf32> to vector<16x16xf32>
    %45 = vector.extract_strided_slice %39 {offsets = [0, 48], sizes = [16, 16], strides = [1, 1]} : vector<16x64xf32> to vector<16x16xf32>
    %46 = vector.shape_cast %42 : vector<16x16xf32> to vector<1x16x16xf32>
    %47 = vector.shape_cast %43 : vector<16x16xf32> to vector<1x16x16xf32>
    %48 = vector.shape_cast %44 : vector<16x16xf32> to vector<1x16x16xf32>
    %49 = vector.shape_cast %45 : vector<16x16xf32> to vector<1x16x16xf32>
    %50 = tpu.concatenate %46, %47, %48, %49 in 0 : vector<1x16x16xf32>, vector<1x16x16xf32>, vector<1x16x16xf32>, vector<1x16x16xf32> -> vector<4x16x16xf32>
    %51 = arith.truncf %50 : vector<4x16x16xf32> to vector<4x16x16xbf16>
    %52 = vector.extract_strided_slice %40 {offsets = [0, 0], sizes = [16, 16], strides = [1, 1]} : vector<16x32xf32> to vector<16x16xf32>
    %53 = vector.extract_strided_slice %40 {offsets = [0, 0], sizes = [16, 16], strides = [1, 1]} : vector<16x32xf32> to vector<16x16xf32>
    %54 = vector.extract_strided_slice %40 {offsets = [0, 16], sizes = [16, 16], strides = [1, 1]} : vector<16x32xf32> to vector<16x16xf32>
    %55 = vector.extract_strided_slice %40 {offsets = [0, 16], sizes = [16, 16], strides = [1, 1]} : vector<16x32xf32> to vector<16x16xf32>
    %56 = vector.shape_cast %52 : vector<16x16xf32> to vector<1x16x16xf32>
    %57 = vector.shape_cast %53 : vector<16x16xf32> to vector<1x16x16xf32>
    %58 = vector.shape_cast %54 : vector<16x16xf32> to vector<1x16x16xf32>
    %59 = vector.shape_cast %55 : vector<16x16xf32> to vector<1x16x16xf32>
    %60 = tpu.concatenate %56, %57, %58, %59 in 0 : vector<1x16x16xf32>, vector<1x16x16xf32>, vector<1x16x16xf32>, vector<1x16x16xf32> -> vector<4x16x16xf32>
    %61 = arith.truncf %60 : vector<4x16x16xf32> to vector<4x16x16xbf16>
    %62 = vector.extract_strided_slice %41 {offsets = [0, 0], sizes = [16, 16], strides = [1, 1]} : vector<16x32xf32> to vector<16x16xf32>
    %63 = vector.extract_strided_slice %41 {offsets = [0, 0], sizes = [16, 16], strides = [1, 1]} : vector<16x32xf32> to vector<16x16xf32>
    %64 = vector.extract_strided_slice %41 {offsets = [0, 16], sizes = [16, 16], strides = [1, 1]} : vector<16x32xf32> to vector<16x16xf32>
    %65 = vector.extract_strided_slice %41 {offsets = [0, 16], sizes = [16, 16], strides = [1, 1]} : vector<16x32xf32> to vector<16x16xf32>
    %66 = vector.shape_cast %62 : vector<16x16xf32> to vector<1x16x16xf32>
    %67 = vector.shape_cast %63 : vector<16x16xf32> to vector<1x16x16xf32>
    %68 = vector.shape_cast %64 : vector<16x16xf32> to vector<1x16x16xf32>
    %69 = vector.shape_cast %65 : vector<16x16xf32> to vector<1x16x16xf32>
    %70 = tpu.concatenate %66, %67, %68, %69 in 0 : vector<1x16x16xf32>, vector<1x16x16xf32>, vector<1x16x16xf32>, vector<1x16x16xf32> -> vector<4x16x16xf32>
    %71 = arith.truncf %70 : vector<4x16x16xf32> to vector<4x16x16xbf16>
    "tpu.trace_start"() <{level = 10 : i32, message = "hmd,hnd->hmn"}> : () -> ()
    %cst_19 = arith.constant dense<0.000000e+00> : vector<4x16x16xf32>
    %72 = tpu.matmul %51, %61, %cst_19 {dimension_numbers = #tpu.dot_dimension_numbers<[2], [2], [1], [1], [0, 0, 0, 1, 1, 1], [0], [0]>} : vector<4x16x16xbf16>, vector<4x16x16xbf16>, vector<4x16x16xf32> -> vector<4x16x16xf32>
    "tpu.trace_stop"() : () -> ()
    %c0_20 = arith.constant 0 : index
    %c0_21 = arith.constant 0 : index
    %73 = vector.load %arg2[%c0_20, %c0_21] : memref<16x16xf32, #tpu.memory_space<vmem>>, vector<16x16xf32>
    %74 = vector.shape_cast %73 : vector<16x16xf32> to vector<1x16x16xf32>
    %75 = vector.broadcast %74 : vector<1x16x16xf32> to vector<4x16x16xf32>
    %76 = arith.addf %72, %75 : vector<4x16x16xf32>
    %cst_22 = arith.constant dense<0xFF800000> : vector<4x16xf32>
    %77 = vector.multi_reduction <maximumf>, %76, %cst_22 [2] : vector<4x16x16xf32> to vector<4x16xf32>
    %78 = vector.shape_cast %77 : vector<4x16xf32> to vector<4x16x1xf32>
    %79 = vector.broadcast %78 : vector<4x16x1xf32> to vector<4x16x16xf32>
    %80 = arith.subf %76, %79 : vector<4x16x16xf32>
    %81 = math.exp %80 : vector<4x16x16xf32>
    %cst_23 = arith.constant dense<0.000000e+00> : vector<4x16xf32>
    %82 = vector.multi_reduction <add>, %81, %cst_23 [2] : vector<4x16x16xf32> to vector<4x16xf32>
    %83 = vector.shape_cast %82 : vector<4x16xf32> to vector<4x16x1xf32>
    %84 = tpu.reciprocal %83 {approx = true} : vector<4x16x1xf32> -> vector<4x16x1xf32>
    %85 = vector.broadcast %84 : vector<4x16x1xf32> to vector<4x16x16xf32>
    %86 = arith.mulf %81, %85 : vector<4x16x16xf32>
    %87 = arith.truncf %86 : vector<4x16x16xf32> to vector<4x16x16xbf16>
    "tpu.trace_start"() <{level = 10 : i32, message = "hmn,hnd->hmd"}> : () -> ()
    %cst_24 = arith.constant dense<0.000000e+00> : vector<4x16x16xf32>
    %88 = tpu.matmul %87, %71, %cst_24 {dimension_numbers = #tpu.dot_dimension_numbers<[2], [1], [1], [2], [0, 0, 0, 1, 1, 2], [0], [0]>} : vector<4x16x16xbf16>, vector<4x16x16xbf16>, vector<4x16x16xf32> -> vector<4x16x16xf32>
    "tpu.trace_stop"() : () -> ()
    %89 = vector.extract_strided_slice %88 {offsets = [0, 0, 0], sizes = [1, 16, 16], strides = [1, 1, 1]} : vector<4x16x16xf32> to vector<1x16x16xf32>
    %90 = vector.shape_cast %89 : vector<1x16x16xf32> to vector<16x16xf32>
    %91 = vector.extract_strided_slice %88 {offsets = [1, 0, 0], sizes = [1, 16, 16], strides = [1, 1, 1]} : vector<4x16x16xf32> to vector<1x16x16xf32>
    %92 = vector.shape_cast %91 : vector<1x16x16xf32> to vector<16x16xf32>
    %93 = vector.extract_strided_slice %88 {offsets = [2, 0, 0], sizes = [1, 16, 16], strides = [1, 1, 1]} : vector<4x16x16xf32> to vector<1x16x16xf32>
    %94 = vector.shape_cast %93 : vector<1x16x16xf32> to vector<16x16xf32>
    %95 = vector.extract_strided_slice %88 {offsets = [3, 0, 0], sizes = [1, 16, 16], strides = [1, 1, 1]} : vector<4x16x16xf32> to vector<1x16x16xf32>
    %96 = vector.shape_cast %95 : vector<1x16x16xf32> to vector<16x16xf32>
    %97 = tpu.concatenate %90, %92, %94, %96 in 1 : vector<16x16xf32>, vector<16x16xf32>, vector<16x16xf32>, vector<16x16xf32> -> vector<16x64xf32>
    %98 = arith.truncf %97 : vector<16x64xf32> to vector<16x64xbf16>
    %c0_25 = arith.constant 0 : index
    %c0_26 = arith.constant 0 : index
    %99 = vector.load %arg9[%c0_25, %c0_26] : memref<64x64xbf16, #tpu.memory_space<vmem>>, vector<64x64xbf16>
    %cst_27 = arith.constant dense<0.000000e+00> : vector<16x64xf32>
    %100 = tpu.matmul %98, %99, %cst_27 {dimension_numbers = #tpu.dot_dimension_numbers<[1], [0], [0], [1], [0, 0, 1, 1], [], []>} : vector<16x64xbf16>, vector<64x64xbf16>, vector<16x64xf32> -> vector<16x64xf32>
    %101 = arith.addf %0, %100 : vector<16x64xf32>
    %c0_28 = arith.constant 0 : index
    %c0_29 = arith.constant 0 : index
    %102 = vector.load %arg7[%c0_28, %c0_29] : memref<1x64xf32, #tpu.memory_space<vmem>>, vector<1x64xf32>
    %103 = arith.mulf %101, %101 : vector<16x64xf32>
    %cst_30 = arith.constant dense<0.000000e+00> : vector<16xf32>
    %104 = vector.multi_reduction <add>, %103, %cst_30 [1] : vector<16x64xf32> to vector<16xf32>
    %105 = vector.shape_cast %104 : vector<16xf32> to vector<16x1xf32>
    %cst_31 = arith.constant 6.400000e+01 : f32
    %106 = vector.broadcast %cst_31 : f32 to vector<16x1xf32>
    %107 = arith.divf %105, %106 : vector<16x1xf32>
    %cst_32 = arith.constant 9.99999997E-7 : f32
    %108 = vector.broadcast %cst_32 : f32 to vector<16x1xf32>
    %109 = arith.addf %107, %108 : vector<16x1xf32>
    %110 = math.rsqrt %109 : vector<16x1xf32>
    %111 = vector.broadcast %110 : vector<16x1xf32> to vector<16x64xf32>
    %112 = arith.mulf %101, %111 : vector<16x64xf32>
    %113 = vector.broadcast %102 : vector<1x64xf32> to vector<16x64xf32>
    %114 = arith.mulf %112, %113 : vector<16x64xf32>
    %115 = arith.truncf %114 : vector<16x64xf32> to vector<16x64xbf16>
    %c0_33 = arith.constant 0 : index
    %c0_34 = arith.constant 0 : index
    %116 = vector.load %arg10[%c0_33, %c0_34] : memref<64x256xbf16, #tpu.memory_space<vmem>>, vector<64x256xbf16>
    %cst_35 = arith.constant dense<0.000000e+00> : vector<16x256xf32>
    %117 = tpu.matmul %115, %116, %cst_35 {dimension_numbers = #tpu.dot_dimension_numbers<[1], [0], [0], [1], [0, 0, 1, 1], [], []>} : vector<16x64xbf16>, vector<64x256xbf16>, vector<16x256xf32> -> vector<16x256xf32>
    %118 = vector.extract_strided_slice %117 {offsets = [0, 0], sizes = [16, 128], strides = [1, 1]} : vector<16x256xf32> to vector<16x128xf32>
    %119 = vector.extract_strided_slice %117 {offsets = [0, 128], sizes = [16, 128], strides = [1, 1]} : vector<16x256xf32> to vector<16x128xf32>
    %120 = arith.negf %118 : vector<16x128xf32>
    %121 = math.exp %120 : vector<16x128xf32>
    %cst_36 = arith.constant 1.000000e+00 : f32
    %122 = vector.broadcast %cst_36 : f32 to vector<16x128xf32>
    %123 = arith.addf %122, %121 : vector<16x128xf32>
    %124 = arith.divf %122, %123 : vector<16x128xf32>
    %125 = arith.mulf %118, %124 : vector<16x128xf32>
    %126 = arith.mulf %125, %119 : vector<16x128xf32>
    %127 = arith.truncf %126 : vector<16x128xf32> to vector<16x128xbf16>
    %c0_37 = arith.constant 0 : index
    %c0_38 = arith.constant 0 : index
    %128 = vector.load %arg11[%c0_37, %c0_38] : memref<128x64xbf16, #tpu.memory_space<vmem>>, vector<128x64xbf16>
    %cst_39 = arith.constant dense<0.000000e+00> : vector<16x64xf32>
    %129 = tpu.matmul %127, %128, %cst_39 {dimension_numbers = #tpu.dot_dimension_numbers<[1], [0], [0], [1], [0, 0, 1, 1], [], []>} : vector<16x128xbf16>, vector<128x64xbf16>, vector<16x64xf32> -> vector<16x64xf32>
    %130 = arith.addf %101, %129 : vector<16x64xf32>
    %131 = vector.extract_strided_slice %130 {offsets = [0, 0], sizes = [8, 64], strides = [1, 1]} : vector<16x64xf32> to vector<8x64xf32>
    %132 = vector.extract_strided_slice %130 {offsets = [8, 0], sizes = [8, 64], strides = [1, 1]} : vector<16x64xf32> to vector<8x64xf32>
    %133 = tpu.concatenate %131, %132 in 1 : vector<8x64xf32>, vector<8x64xf32> -> vector<8x128xf32>
    %c0_40 = arith.constant 0 : index
    %c0_41 = arith.constant 0 : index
    %134 = vector.load %arg12[%c0_40, %c0_41] : memref<8x128xf32, #tpu.memory_space<vmem>>, vector<8x128xf32>
    tpu.vector_store %arg12[%c0_40, %c0_41], %133 {strides = array<i32>} : memref<8x128xf32, #tpu.memory_space<vmem>>, vector<8x128xf32>,
    return
  }
}

</mosaic_0001>

<llo_original>
// kernel: decoder_layer_emb_forward.1
$region0: #{decoder_layer_emb_forward.1}
  #allocation0 [shape = 'u32[]', space=smem, size = 0x4, offset = 0x4, fixed_abs, tag = 'smem constant byte address 0x4 - core index']
  #allocation1 [shape = 'u32[72,128]{1,0:T(1,128)}', space=vmem, size = 0x9000, scoped, tag = 'internal scratch']
  %s0 = inlined_call_operand.hbm [shape: f32[16,64], index: 0, kind: input, shape index: {}]
  %s1 = inlined_call_operand.hbm [shape: f32[16,64], index: 1, kind: input, shape index: {}]
  %s2 = inlined_call_operand.hbm [shape: f32[16,16], index: 2, kind: input, shape index: {}]
  %s3 = inlined_call_operand.hbm [shape: f32[16,128], index: 3, kind: input, shape index: {}]
  %s4 = inlined_call_operand.hbm [shape: f32[16,128], index: 4, kind: input, shape index: {}]
  %s5 = inlined_call_operand.vmem [shape: f32[1,64], index: 5, kind: input, shape index: {}]
  %s6 = inlined_call_operand.vmem [shape: f32[1,64], index: 6, kind: input, shape index: {}]
  %s7 = inlined_call_operand.vmem [shape: f32[1,64], index: 7, kind: input, shape index: {}]
  %s8 = inlined_call_operand.hbm [shape: bf16[128,256], index: 8, kind: input, shape index: {}]
  %s9 = inlined_call_operand.vmem [shape: bf16[64,64], index: 9, kind: input, shape index: {}]
  %s10 = inlined_call_operand.vmem [shape: bf16[64,256], index: 10, kind: input, shape index: {}]
  %s11 = inlined_call_operand.vmem [shape: bf16[128,64], index: 11, kind: input, shape index: {}]
  %s12 = inlined_call_operand.vmem [shape: f32[8,128], index: 12, kind: output, shape index: {}]
  %s13 = sld [smem:[#allocation0]]
  $region82: #{decoder_layer_emb_forward.1} parent=0
    _
  %s15 = ssub.s32 1, %s13
  %s16 = scalar_select 0, %s15, %s13
  $region1: #{decoder_layer_emb_forward.1} parent=0
    #allocation2 [shape = 'u8[8192]{0}', space=vmem, size = 0x2000, scoped, tag = 'input window, operand 0, single buffered']
    #allocation3 [shape = 's32[1]{0}', space=sflag, size = 0x4, scoped, tag = 'scoped memory for decoder_layer_emb_forward.1']
    #allocation4 [shape = 'u8[8192]{0}', space=vmem, size = 0x2000, scoped, tag = 'input window, operand 1, single buffered']
    #allocation5 [shape = 's32[1]{0}', space=sflag, size = 0x4, scoped, tag = 'scoped memory for decoder_layer_emb_forward.1']
    #allocation6 [shape = 'u8[8192]{0}', space=vmem, size = 0x2000, scoped, tag = 'input window, operand 2, single buffered']
    #allocation7 [shape = 'u8[8192]{0}', space=vmem, size = 0x2000, scoped, tag = 'input window, operand 3, single buffered']
    #allocation8 [shape = 's32[1]{0}', space=sflag, size = 0x4, scoped, tag = 'scoped memory for decoder_layer_emb_forward.1']
    #allocation9 [shape = 'u8[8192]{0}', space=vmem, size = 0x2000, scoped, tag = 'input window, operand 4, single buffered']
    #allocation10 [shape = 'u8[65536]{0}', space=vmem, size = 0x10000, scoped, tag = 'input window, operand 8, single buffered']
    #allocation11 [shape = 's32[1]{0}', space=sflag, size = 0x4, scoped, tag = 'scoped memory for decoder_layer_emb_forward.1']
    %17 = vsyncpa [#allocation3], 0
    %18 = vsyncpa [#allocation5], 0
    %19 = vsyncpa [#allocation8], 0
    %20 = vsyncpa [#allocation11], 0
    // Predicated region
    $region2: #{decoder_layer_emb_forward.1} parent=1 // pred_check
      _
    $region3: #{decoder_layer_emb_forward.1} parent=1 // pred_check_branch
      %22 = sbr.rel (0) target = $region5
    $region4: #{decoder_layer_emb_forward.1} parent=1 // pred_region
      %24 = vsyncadd [#allocation3], 0
      %s25 = sshll.u32 %s0, 4
      %s26 = int_to_ptr.hbm [resolvable:$true] %s25
      %s27 = sshll.u32 [#allocation2], 4
      %s28 = int_to_ptr.vmem [resolvable:$true] %s27
      %33 = dma.hbm_to_vmem [thread:$0]  %s26, 256, %s28, [#allocation3], 128, 128, 8
    $region5: #{decoder_layer_emb_forward.1} parent=1 // pred_fallthru
      _
    // Predicated region
    $region6: #{decoder_layer_emb_forward.1} parent=1 // pred_check
      _
    $region7: #{decoder_layer_emb_forward.1} parent=1 // pred_check_branch
      %35 = sbr.rel (0) target = $region9
    $region8: #{decoder_layer_emb_forward.1} parent=1 // pred_region
      %37 = vsyncadd [#allocation5], 0
      %s38 = sshll.u32 %s1, 4
      %s39 = int_to_ptr.hbm [resolvable:$true] %s38
      %s40 = sshll.u32 [#allocation4], 4
      %s41 = int_to_ptr.vmem [resolvable:$true] %s40
      %46 = dma.hbm_to_vmem [thread:$0]  %s39, 256, %s41, [#allocation5], 128, 128, 8
    $region9: #{decoder_layer_emb_forward.1} parent=1 // pred_fallthru
      _
    // Predicated region
    $region10: #{decoder_layer_emb_forward.1} parent=1 // pred_check
      _
    $region11: #{decoder_layer_emb_forward.1} parent=1 // pred_check_branch
      %48 = sbr.rel (0) target = $region13
    $region12: #{decoder_layer_emb_forward.1} parent=1 // pred_region
      %50 = vsyncadd [#allocation5], 0
      %s51 = sshll.u32 %s2, 4
      %s52 = int_to_ptr.hbm [resolvable:$true] %s51
      %s53 = sshll.u32 [#allocation6], 4
      %s54 = int_to_ptr.vmem [resolvable:$true] %s53
      %59 = dma.hbm_to_vmem [thread:$0]  %s52, 256, %s54, [#allocation5], 128, 128, 8
    $region13: #{decoder_layer_emb_forward.1} parent=1 // pred_fallthru
      _
    // Predicated region
    $region14: #{decoder_layer_emb_forward.1} parent=1 // pred_check
      _
    $region15: #{decoder_layer_emb_forward.1} parent=1 // pred_check_branch
      %61 = sbr.rel (0) target = $region17
    $region16: #{decoder_layer_emb_forward.1} parent=1 // pred_region
      %63 = vsyncadd [#allocation8], 0
      %s64 = sshll.u32 %s3, 4
      %s65 = int_to_ptr.hbm [resolvable:$true] %s64
      %s66 = sshll.u32 [#allocation7], 4
      %s67 = int_to_ptr.vmem [resolvable:$true] %s66
      %72 = dma.hbm_to_vmem [thread:$0]  %s65, 256, %s67, [#allocation8], 128, 128, 8
    $region17: #{decoder_layer_emb_forward.1} parent=1 // pred_fallthru
      _
    // Predicated region
    $region18: #{decoder_layer_emb_forward.1} parent=1 // pred_check
      _
    $region19: #{decoder_layer_emb_forward.1} parent=1 // pred_check_branch
      %74 = sbr.rel (0) target = $region21
    $region20: #{decoder_layer_emb_forward.1} parent=1 // pred_region
      %76 = vsyncadd [#allocation8], 0
      %s77 = sshll.u32 %s4, 4
      %s78 = int_to_ptr.hbm [resolvable:$true] %s77
      %s79 = sshll.u32 [#allocation9], 4
      %s80 = int_to_ptr.vmem [resolvable:$true] %s79
      %85 = dma.hbm_to_vmem [thread:$0]  %s78, 256, %s80, [#allocation8], 128, 128, 8
    $region21: #{decoder_layer_emb_forward.1} parent=1 // pred_fallthru
      _
    // Predicated region
    $region22: #{decoder_layer_emb_forward.1} parent=1 // pred_check
      _
    $region23: #{decoder_layer_emb_forward.1} parent=1 // pred_check_branch
      %87 = sbr.rel (0) target = $region25
    $region24: #{decoder_layer_emb_forward.1} parent=1 // pred_region
      _
    $region25: #{decoder_layer_emb_forward.1} parent=1 // pred_fallthru
      _
    // Predicated region
    $region26: #{decoder_layer_emb_forward.1} parent=1 // pred_check
      _
    $region27: #{decoder_layer_emb_forward.1} parent=1 // pred_check_branch
      %89 = sbr.rel (0) target = $region29
    $region28: #{decoder_layer_emb_forward.1} parent=1 // pred_region
      _
    $region29: #{decoder_layer_emb_forward.1} parent=1 // pred_fallthru
      _
    // Predicated region
    $region30: #{decoder_layer_emb_forward.1} parent=1 // pred_check
      _
    $region31: #{decoder_layer_emb_forward.1} parent=1 // pred_check_branch
      %91 = sbr.rel (0) target = $region33
    $region32: #{decoder_layer_emb_forward.1} parent=1 // pred_region
      _
    $region33: #{decoder_layer_emb_forward.1} parent=1 // pred_fallthru
      _
    // Predicated region
    $region34: #{decoder_layer_emb_forward.1} parent=1 // pred_check
      _
    $region35: #{decoder_layer_emb_forward.1} parent=1 // pred_check_branch
      %93 = sbr.rel (0) target = $region37
    $region36: #{decoder_layer_emb_forward.1} parent=1 // pred_region
      %95 = vsyncadd [#allocation11], 0
      %s96 = sshll.u32 %s8, 4
      %s97 = int_to_ptr.hbm [resolvable:$true] %s96
      %s98 = sshll.u32 [#allocation10], 4
      %s99 = int_to_ptr.vmem [resolvable:$true] %s98
      %104 = dma.hbm_to_vmem [thread:$0]  %s97, 2048, %s99, [#allocation11], 128, 128, 8
    $region37: #{decoder_layer_emb_forward.1} parent=1 // pred_fallthru
      _
    // Predicated region
    $region38: #{decoder_layer_emb_forward.1} parent=1 // pred_check
      _
    $region39: #{decoder_layer_emb_forward.1} parent=1 // pred_check_branch
      %106 = sbr.rel (0) target = $region41
    $region40: #{decoder_layer_emb_forward.1} parent=1 // pred_region
      _
    $region41: #{decoder_layer_emb_forward.1} parent=1 // pred_fallthru
      _
    // Predicated region
    $region42: #{decoder_layer_emb_forward.1} parent=1 // pred_check
      _
    $region43: #{decoder_layer_emb_forward.1} parent=1 // pred_check_branch
      %108 = sbr.rel (0) target = $region45
    $region44: #{decoder_layer_emb_forward.1} parent=1 // pred_region
      _
    $region45: #{decoder_layer_emb_forward.1} parent=1 // pred_fallthru
      _
    // Predicated region
    $region46: #{decoder_layer_emb_forward.1} parent=1 // pred_check
      _
    $region47: #{decoder_layer_emb_forward.1} parent=1 // pred_check_branch
      %110 = sbr.rel (0) target = $region49
    $region48: #{decoder_layer_emb_forward.1} parent=1 // pred_region
      _
    $region49: #{decoder_layer_emb_forward.1} parent=1 // pred_fallthru
      _
    // Predicated region
    $region50: #{decoder_layer_emb_forward.1} parent=1 // pred_check
      _
    $region51: #{decoder_layer_emb_forward.1} parent=1 // pred_check_branch
      %112 = sbr.rel (0) target = $region53
    $region52: #{decoder_layer_emb_forward.1} parent=1 // pred_region
      %114 = dma.done [#allocation3], 256
    $region53: #{decoder_layer_emb_forward.1} parent=1 // pred_fallthru
      _
    // Predicated region
    $region54: #{decoder_layer_emb_forward.1} parent=1 // pred_check
      _
    $region55: #{decoder_layer_emb_forward.1} parent=1 // pred_check_branch
      %116 = sbr.rel (0) target = $region57
    $region56: #{decoder_layer_emb_forward.1} parent=1 // pred_region
      %118 = dma.done [#allocation5], 256
    $region57: #{decoder_layer_emb_forward.1} parent=1 // pred_fallthru
      _
    // Predicated region
    $region58: #{decoder_layer_emb_forward.1} parent=1 // pred_check
      _
    $region59: #{decoder_layer_emb_forward.1} parent=1 // pred_check_branch
      %120 = sbr.rel (0) target = $region61
    $region60: #{decoder_layer_emb_forward.1} parent=1 // pred_region
      %122 = dma.done [#allocation5], 256
    $region61: #{decoder_layer_emb_forward.1} parent=1 // pred_fallthru
      _
    // Predicated region
    $region62: #{decoder_layer_emb_forward.1} parent=1 // pred_check
      _
    $region63: #{decoder_layer_emb_forward.1} parent=1 // pred_check_branch
      %124 = sbr.rel (0) target = $region65
    $region64: #{decoder_layer_emb_forward.1} parent=1 // pred_region
      %126 = dma.done [#allocation8], 256
    $region65: #{decoder_layer_emb_forward.1} parent=1 // pred_fallthru
      _
    // Predicated region
    $region66: #{decoder_layer_emb_forward.1} parent=1 // pred_check
      _
    $region67: #{decoder_layer_emb_forward.1} parent=1 // pred_check_branch
      %128 = sbr.rel (0) target = $region69
    $region68: #{decoder_layer_emb_forward.1} parent=1 // pred_region
      %130 = dma.done [#allocation8], 256
    $region69: #{decoder_layer_emb_forward.1} parent=1 // pred_fallthru
      _
    // Predicated region
    $region70: #{decoder_layer_emb_forward.1} parent=1 // pred_check
      _
    $region71: #{decoder_layer_emb_forward.1} parent=1 // pred_check_branch
      %132 = sbr.rel (0) target = $region73
    $region72: #{decoder_layer_emb_forward.1} parent=1 // pred_region
      %134 = dma.done [#allocation11], 2048
    $region73: #{decoder_layer_emb_forward.1} parent=1 // pred_fallthru
      _
    %v136 = vld [vmem:[#allocation4] sm:$0xff]
    %v137 = vld [vmem:[#allocation4 + $0x8] sm:$0xff]
    %v138 = vld [vmem:[#allocation2] sm:$0xff]
    %v139 = vld [vmem:[#allocation2 + $0x8] sm:$0xff]
    %v140 = vld [vmem:[%s5] sm:$0x1]
    %v141 = vmul.f32 %v138, %v138
    %v142 = vmul.f32 %v139, %v139
    %vm143 = vcmask 523264
    %v144 = vsel %vm143, %v141, 0.0
    %145 = vadd.xlane.f32.xlu0 %v144
    %v146 = vpop.xlane.xlu0 %145
    %v147 = vsel %vm143, %v142, 0.0
    %148 = vadd.xlane.f32.xlu0 %v147
    %v149 = vpop.xlane.xlu0 %148
    %v150 = vrcp.pop 64.0
    %v151 = vmul.f32 64.0, %v150
    %v152 = vsub.f32 1.0, %v151
    %v153 = vmul.f32 %v150, %v152
    %v154 = vadd.f32 %v150, %v153
    %vm155 = vweird.f32 %v150
    %v156 = vsel %vm155, %v150, %v154
    %v157 = vmul.f32 %v146, %v156
    %v158 = vmul.f32 %v149, %v156
    %v159 = vadd.f32 %v157, 1e-06
    %v160 = vadd.f32 %v158, 1e-06
    %v161 = vrsqrt.pop %v159
    %v162 = vmul.f32 %v161, %v159
    %v163 = vmul.f32 %v162, %v161
    %v164 = vmul.f32 0.5, %v163
    %v165 = vsub.f32 1.5, %v164
    %v166 = vmul.f32 %v161, %v165
    %vm167 = vweird.f32 %v159
    %vm168 = vweird.f32 %v161
    %vm169 = vmor %vm167, %vm168
    %v170 = vsel %vm169, %v161, %v166
    %v171 = vrsqrt.pop %v160
    %v172 = vmul.f32 %v171, %v160
    %v173 = vmul.f32 %v172, %v171
    %v174 = vmul.f32 0.5, %v173
    %v175 = vsub.f32 1.5, %v174
    %v176 = vmul.f32 %v171, %v175
    %vm177 = vweird.f32 %v160
    %vm178 = vweird.f32 %v171
    %vm179 = vmor %vm177, %vm178
    %v180 = vsel %vm179, %v171, %v176
    %v181 = vmul.f32 %v138, %v170
    %v182 = vmul.f32 %v139, %v180
    %v184 = vperm.slane %v140, 0
    %v186 = vmul.f32 %v181, %v184
    %v187 = vmul.f32 %v182, %v184
    %v188 = vld [vmem:[%s6] sm:$0x1]
    %v189 = vmul.f32 %v136, %v136
    %v190 = vmul.f32 %v137, %v137
    %v191 = vsel %vm143, %v189, 0.0
    %192 = vadd.xlane.f32.xlu0 %v191
    %v193 = vpop.xlane.xlu0 %192
    %v194 = vsel %vm143, %v190, 0.0
    %195 = vadd.xlane.f32.xlu0 %v194
    %v196 = vpop.xlane.xlu0 %195
    %v197 = vmul.f32 %v193, %v156
    %v198 = vmul.f32 %v196, %v156
    %v199 = vadd.f32 %v197, 1e-06
    %v200 = vadd.f32 %v198, 1e-06
    %v201 = vrsqrt.pop %v199
    %v202 = vmul.f32 %v201, %v199
    %v203 = vmul.f32 %v202, %v201
    %v204 = vmul.f32 0.5, %v203
    %v205 = vsub.f32 1.5, %v204
    %v206 = vmul.f32 %v201, %v205
    %vm207 = vweird.f32 %v199
    %vm208 = vweird.f32 %v201
    %vm209 = vmor %vm207, %vm208
    %v210 = vsel %vm209, %v201, %v206
    %v211 = vrsqrt.pop %v200
    %v212 = vmul.f32 %v211, %v200
    %v213 = vmul.f32 %v212, %v211
    %v214 = vmul.f32 0.5, %v213
    %v215 = vsub.f32 1.5, %v214
    %v216 = vmul.f32 %v211, %v215
    %vm217 = vweird.f32 %v200
    %vm218 = vweird.f32 %v211
    %vm219 = vmor %vm217, %vm218
    %v220 = vsel %vm219, %v211, %v216
    %v221 = vmul.f32 %v136, %v210
    %v222 = vmul.f32 %v137, %v220
    %v224 = vperm.slane %v188, 0
    %v226 = vmul.f32 %v221, %v224
    %v227 = vmul.f32 %v222, %v224
    %230 = vrot.lane.b32.xlu0 %v226, 64
    %v231 = vpop.permute.xlu0 %230
    %232 = vrot.lane.b32.xlu0 %v227, 64
    %v233 = vpop.permute.xlu0 %232
    %v236 = vsel %vm143, %v186, %v231
    %v237 = vsel %vm143, %v187, %v233
    %v238 = vpack.c.bf16 %v237, %v236
    %v239 = vld [vmem:[#allocation10] sm:$0xff]
    %v240 = vld [vmem:[#allocation10 + $0x8] sm:$0xff]
    %v241 = vld [vmem:[#allocation10 + $0x10] sm:$0xff]
    %v242 = vld [vmem:[#allocation10 + $0x18] sm:$0xff]
    %v243 = vld [vmem:[#allocation10 + $0x20] sm:$0xff]
    %v244 = vld [vmem:[#allocation10 + $0x28] sm:$0xff]
    %v245 = vld [vmem:[#allocation10 + $0x30] sm:$0xff]
    %v246 = vld [vmem:[#allocation10 + $0x38] sm:$0xff]
    %v247 = vld [vmem:[#allocation10 + $0x40] sm:$0xff]
    %v248 = vld [vmem:[#allocation10 + $0x48] sm:$0xff]
    %v249 = vld [vmem:[#allocation10 + $0x50] sm:$0xff]
    %v250 = vld [vmem:[#allocation10 + $0x58] sm:$0xff]
    %v251 = vld [vmem:[#allocation10 + $0x60] sm:$0xff]
    %v252 = vld [vmem:[#allocation10 + $0x68] sm:$0xff]
    %v253 = vld [vmem:[#allocation10 + $0x70] sm:$0xff]
    %v254 = vld [vmem:[#allocation10 + $0x78] sm:$0xff]
    %v271 = vunpack.c.l.b16 %v239
    %v272 = vunpack.c.h.b16 %v239
    %v273 = vunpack.c.l.b16 %v240
    %v274 = vunpack.c.h.b16 %v240
    %v275 = vunpack.c.l.b16 %v241
    %v276 = vunpack.c.h.b16 %v241
    %v277 = vunpack.c.l.b16 %v242
    %v278 = vunpack.c.h.b16 %v242
    %v279 = vunpack.c.l.b16 %v243
    %v280 = vunpack.c.h.b16 %v243
    %v281 = vunpack.c.l.b16 %v244
    %v282 = vunpack.c.h.b16 %v244
    %v283 = vunpack.c.l.b16 %v245
    %v284 = vunpack.c.h.b16 %v245
    %v285 = vunpack.c.l.b16 %v246
    %v286 = vunpack.c.h.b16 %v246
    %v287 = vunpack.c.l.b16 %v247
    %v288 = vunpack.c.h.b16 %v247
    %v289 = vunpack.c.l.b16 %v248
    %v290 = vunpack.c.h.b16 %v248
    %v291 = vunpack.c.l.b16 %v249
    %v292 = vunpack.c.h.b16 %v249
    %v293 = vunpack.c.l.b16 %v250
    %v294 = vunpack.c.h.b16 %v250
    %v295 = vunpack.c.l.b16 %v251
    %v296 = vunpack.c.h.b16 %v251
    %v297 = vunpack.c.l.b16 %v252
    %v298 = vunpack.c.h.b16 %v252
    %v299 = vunpack.c.l.b16 %v253
    %v300 = vunpack.c.h.b16 %v253
    %v301 = vunpack.c.l.b16 %v254
    %v302 = vunpack.c.h.b16 %v254
    %v303 = vpack.c.b16 %v273, %v271
    %v304 = vpack.c.b16 %v274, %v272
    %v305 = vpack.c.b16 %v277, %v275
    %v306 = vpack.c.b16 %v278, %v276
    %v307 = vpack.c.b16 %v281, %v279
    %v308 = vpack.c.b16 %v282, %v280
    %v309 = vpack.c.b16 %v285, %v283
    %v310 = vpack.c.b16 %v286, %v284
    %v311 = vpack.c.b16 %v289, %v287
    %v312 = vpack.c.b16 %v290, %v288
    %v313 = vpack.c.b16 %v293, %v291
    %v314 = vpack.c.b16 %v294, %v292
    %v315 = vpack.c.b16 %v297, %v295
    %v316 = vpack.c.b16 %v298, %v296
    %v317 = vpack.c.b16 %v301, %v299
    %v318 = vpack.c.b16 %v302, %v300
    %335 = vmatpush.bf16.msra.mxu0 %v317
    %336 = vmatpush.bf16.msra.mxu0 %v315
    %337 = vmatpush.bf16.msra.mxu0 %v313
    %338 = vmatpush.bf16.msra.mxu0 %v311
    %339 = vmatpush.bf16.msra.mxu0 %v309
    %340 = vmatpush.bf16.msra.mxu0 %v307
    %341 = vmatpush.bf16.msra.mxu0 %v305
    %342 = vmatpush.bf16.msra.mxu0 %v303
    %343 = vmatmul.bf16.gmra.mxu0 %v238
    %v344 = vpop.f32.mrf.mxu0
    %v345 = vadd.f32 0.0, %v344
    %v346 = vpop.f32.mrf.mxu0
    %v347 = vadd.f32 0.0, %v346
    %348 = vdwg.mxu0
    %349 = vmatpush.bf16.msra.mxu0 %v318
    %350 = vmatpush.bf16.msra.mxu0 %v316
    %351 = vmatpush.bf16.msra.mxu0 %v314
    %352 = vmatpush.bf16.msra.mxu0 %v312
    %353 = vmatpush.bf16.msra.mxu0 %v310
    %354 = vmatpush.bf16.msra.mxu0 %v308
    %355 = vmatpush.bf16.msra.mxu0 %v306
    %356 = vmatpush.bf16.msra.mxu0 %v304
    %357 = vmatmul.bf16.gmra.mxu0 %v238
    %v358 = vpop.f32.mrf.mxu0
    %v359 = vadd.f32 0.0, %v358
    %v360 = vpop.f32.mrf.mxu0
    %v361 = vadd.f32 0.0, %v360
    %362 = vdwg.mxu0
    %v363 = vld [vmem:[#allocation7] sm:$0xff]
    %v364 = vld [vmem:[#allocation7 + $0x8] sm:$0xff]
    %v365 = vmul.f32 %v345, %v363
    %v366 = vmul.f32 %v347, %v364
    %v367 = vld [vmem:[#allocation9] sm:$0xff]
    %v368 = vld [vmem:[#allocation9 + $0x8] sm:$0xff]
    %v369 = vmul.f32 %v359, %v367
    %v370 = vmul.f32 %v361, %v368
    %v371 = vadd.f32 %v365, %v369
    %v372 = vadd.f32 %v366, %v370
    %375 = vrot.lane.b32.xlu0 %v371, 112
    %v376 = vpop.permute.xlu0 %375
    %377 = vrot.lane.b32.xlu0 %v372, 112
    %v378 = vpop.permute.xlu0 %377
    %381 = vrot.lane.b32.xlu0 %v371, 96
    %v382 = vpop.permute.xlu0 %381
    %383 = vrot.lane.b32.xlu0 %v372, 96
    %v384 = vpop.permute.xlu0 %383
    %387 = vrot.lane.b32.xlu0 %v371, 80
    %v388 = vpop.permute.xlu0 %387
    %389 = vrot.lane.b32.xlu0 %v372, 80
    %v390 = vpop.permute.xlu0 %389
    %v393 = vpack.c.bf16 %v371, %v371
    %v394 = vpack.c.bf16 %v372, %v372
    %v395 = vpack.c.bf16 %v376, %v376
    %v396 = vpack.c.bf16 %v378, %v378
    %v397 = vpack.c.bf16 %v382, %v382
    %v398 = vpack.c.bf16 %v384, %v384
    %v399 = vpack.c.bf16 %v388, %v388
    %v400 = vpack.c.bf16 %v390, %v390
    %v401 = vld [vmem:[#allocation6] sm:$0xff]
    %v402 = vld [vmem:[#allocation6 + $0x8] sm:$0xff]
    %v405 = vunpack.c.l.b16 %v393
    %v406 = vunpack.c.l.b16 %v394
    %v407 = vpack.c.b16 %v406, %v405
    %408 = vrot.lane.b32.xlu0 %v407, 64
    %v409 = vpop.permute.xlu0 %408
    %vm410 = vcmask 130048
    %v412 = vsel %vm410, %v407, 0
    %v415 = vsel %vm410, %v409, 0
    %417 = vmatpush.bf16.xpose.msra.mxu0 0
    %418 = vmatpush.bf16.xpose.msra.mxu0 0
    %419 = vmatpush.bf16.xpose.msra.mxu0 0
    %420 = vmatpush.bf16.xpose.msra.mxu0 0
    %421 = vmatpush.bf16.xpose.msra.mxu0 0
    %422 = vmatpush.bf16.xpose.msra.mxu0 0
    %423 = vmatpush.bf16.xpose.msra.mxu0 0
    %424 = vmatpush.bf16.xpose.msra.mxu0 %v415
    %425 = vmatmul.bf16.gmra.mxu0 %v412
    %v426 = vpop.f32.mrf.mxu0
    %v427 = vadd.f32 %v401, %v426
    %v428 = vpop.f32.mrf.mxu0
    %v429 = vadd.f32 %v402, %v428
    %430 = vdwg.mxu0
    %v433 = vunpack.c.l.b16 %v395
    %v434 = vunpack.c.l.b16 %v396
    %v435 = vpack.c.b16 %v434, %v433
    %v437 = vsel %vm410, %v435, 0
    %439 = vmatpush.bf16.xpose.msra.mxu0 0
    %440 = vmatpush.bf16.xpose.msra.mxu0 0
    %441 = vmatpush.bf16.xpose.msra.mxu0 0
    %442 = vmatpush.bf16.xpose.msra.mxu0 0
    %443 = vmatpush.bf16.xpose.msra.mxu0 0
    %444 = vmatpush.bf16.xpose.msra.mxu0 0
    %445 = vmatpush.bf16.xpose.msra.mxu0 0
    %446 = vmatpush.bf16.xpose.msra.mxu0 %v415
    %447 = vmatmul.bf16.gmra.mxu0 %v437
    %v448 = vpop.f32.mrf.mxu0
    %v449 = vadd.f32 %v401, %v448
    %v450 = vpop.f32.mrf.mxu0
    %v451 = vadd.f32 %v402, %v450
    %452 = vdwg.mxu0
    %v455 = vunpack.c.l.b16 %v397
    %v456 = vunpack.c.l.b16 %v398
    %v457 = vpack.c.b16 %v456, %v455
    %458 = vrot.lane.b32.xlu0 %v435, 64
    %v459 = vpop.permute.xlu0 %458
    %v461 = vsel %vm410, %v457, 0
    %v464 = vsel %vm410, %v459, 0
    %466 = vmatpush.bf16.xpose.msra.mxu0 0
    %467 = vmatpush.bf16.xpose.msra.mxu0 0
    %468 = vmatpush.bf16.xpose.msra.mxu0 0
    %469 = vmatpush.bf16.xpose.msra.mxu0 0
    %470 = vmatpush.bf16.xpose.msra.mxu0 0
    %471 = vmatpush.bf16.xpose.msra.mxu0 0
    %472 = vmatpush.bf16.xpose.msra.mxu0 0
    %473 = vmatpush.bf16.xpose.msra.mxu0 %v464
    %474 = vmatmul.bf16.gmra.mxu0 %v461
    %v475 = vpop.f32.mrf.mxu0
    %v476 = vadd.f32 %v401, %v475
    %v477 = vpop.f32.mrf.mxu0
    %v478 = vadd.f32 %v402, %v477
    %479 = vdwg.mxu0
    %v482 = vunpack.c.l.b16 %v399
    %v483 = vunpack.c.l.b16 %v400
    %v484 = vpack.c.b16 %v483, %v482
    %v486 = vsel %vm410, %v484, 0
    %488 = vmatpush.bf16.xpose.msra.mxu0 0
    %489 = vmatpush.bf16.xpose.msra.mxu0 0
    %490 = vmatpush.bf16.xpose.msra.mxu0 0
    %491 = vmatpush.bf16.xpose.msra.mxu0 0
    %492 = vmatpush.bf16.xpose.msra.mxu0 0
    %493 = vmatpush.bf16.xpose.msra.mxu0 0
    %494 = vmatpush.bf16.xpose.msra.mxu0 0
    %495 = vmatpush.bf16.xpose.msra.mxu0 %v464
    %496 = vmatmul.bf16.gmra.mxu0 %v486
    %v497 = vpop.f32.mrf.mxu0
    %v498 = vadd.f32 %v401, %v497
    %v499 = vpop.f32.mrf.mxu0
    %v500 = vadd.f32 %v402, %v499
    %501 = vdwg.mxu0
    %v502 = vsel %vm410, %v427, -inf
    %503 = vmax.xlane.f32.xlu0 %v502
    %v504 = vpop.xlane.xlu0 %503
    %v505 = vsel %vm410, %v429, -inf
    %506 = vmax.xlane.f32.xlu0 %v505
    %v507 = vpop.xlane.xlu0 %506
    %v508 = vsel %vm410, %v449, -inf
    %509 = vmax.xlane.f32.xlu0 %v508
    %v510 = vpop.xlane.xlu0 %509
    %v511 = vsel %vm410, %v451, -inf
    %512 = vmax.xlane.f32.xlu0 %v511
    %v513 = vpop.xlane.xlu0 %512
    %v514 = vsel %vm410, %v476, -inf
    %515 = vmax.xlane.f32.xlu0 %v514
    %v516 = vpop.xlane.xlu0 %515
    %v517 = vsel %vm410, %v478, -inf
    %518 = vmax.xlane.f32.xlu0 %v517
    %v519 = vpop.xlane.xlu0 %518
    %v520 = vsel %vm410, %v498, -inf
    %521 = vmax.xlane.f32.xlu0 %v520
    %v522 = vpop.xlane.xlu0 %521
    %v523 = vsel %vm410, %v500, -inf
    %524 = vmax.xlane.f32.xlu0 %v523
    %v525 = vpop.xlane.xlu0 %524
    %v526 = vsub.f32 %v427, %v504
    %v527 = vsub.f32 %v429, %v507
    %v528 = vsub.f32 %v449, %v510
    %v529 = vsub.f32 %v451, %v513
    %v530 = vsub.f32 %v476, %v516
    %v531 = vsub.f32 %v478, %v519
    %v532 = vsub.f32 %v498, %v522
    %v533 = vsub.f32 %v500, %v525
    %v534 = vmul.f32 %v526, 1.442695
    %v535 = vpow.pop %v534
    %v536 = vmul.f32 %v527, 1.442695
    %v537 = vpow.pop %v536
    %v538 = vmul.f32 %v528, 1.442695
    %v539 = vpow.pop %v538
    %v540 = vmul.f32 %v529, 1.442695
    %v541 = vpow.pop %v540
    %v542 = vmul.f32 %v530, 1.442695
    %v543 = vpow.pop %v542
    %v544 = vmul.f32 %v531, 1.442695
    %v545 = vpow.pop %v544
    %v546 = vmul.f32 %v532, 1.442695
    %v547 = vpow.pop %v546
    %v548 = vmul.f32 %v533, 1.442695
    %v549 = vpow.pop %v548
    %v550 = vsel %vm410, %v535, 0.0
    %551 = vadd.xlane.f32.xlu0 %v550
    %v552 = vpop.xlane.xlu0 %551
    %v553 = vsel %vm410, %v537, 0.0
    %554 = vadd.xlane.f32.xlu0 %v553
    %v555 = vpop.xlane.xlu0 %554
    %v556 = vsel %vm410, %v539, 0.0
    %557 = vadd.xlane.f32.xlu0 %v556
    %v558 = vpop.xlane.xlu0 %557
    %v559 = vsel %vm410, %v541, 0.0
    %560 = vadd.xlane.f32.xlu0 %v559
    %v561 = vpop.xlane.xlu0 %560
    %v562 = vsel %vm410, %v543, 0.0
    %563 = vadd.xlane.f32.xlu0 %v562
    %v564 = vpop.xlane.xlu0 %563
    %v565 = vsel %vm410, %v545, 0.0
    %566 = vadd.xlane.f32.xlu0 %v565
    %v567 = vpop.xlane.xlu0 %566
    %v568 = vsel %vm410, %v547, 0.0
    %569 = vadd.xlane.f32.xlu0 %v568
    %v570 = vpop.xlane.xlu0 %569
    %v571 = vsel %vm410, %v549, 0.0
    %572 = vadd.xlane.f32.xlu0 %v571
    %v573 = vpop.xlane.xlu0 %572
    %v574 = vrcp.pop %v552
    %v575 = vrcp.pop %v555
    %v576 = vrcp.pop %v558
    %v577 = vrcp.pop %v561
    %v578 = vrcp.pop %v564
    %v579 = vrcp.pop %v567
    %v580 = vrcp.pop %v570
    %v581 = vrcp.pop %v573
    %v582 = vmul.f32 %v535, %v574
    %v583 = vmul.f32 %v537, %v575
    %v584 = vmul.f32 %v539, %v576
    %v585 = vmul.f32 %v541, %v577
    %v586 = vmul.f32 %v543, %v578
    %v587 = vmul.f32 %v545, %v579
    %v588 = vmul.f32 %v547, %v580
    %v589 = vmul.f32 %v549, %v581
    %v590 = vpack.c.bf16 %v582, %v582
    %v591 = vpack.c.bf16 %v583, %v583
    %v592 = vpack.c.bf16 %v584, %v584
    %v593 = vpack.c.bf16 %v585, %v585
    %v594 = vpack.c.bf16 %v586, %v586
    %v595 = vpack.c.bf16 %v587, %v587
    %v596 = vpack.c.bf16 %v588, %v588
    %v597 = vpack.c.bf16 %v589, %v589
    %v600 = vunpack.c.l.b16 %v590
    %v601 = vunpack.c.l.b16 %v591
    %v602 = vpack.c.b16 %v601, %v600
    %603 = vrot.lane.b32.xlu0 %v407, 32
    %v604 = vpop.permute.xlu0 %603
    %v607 = vsel %vm410, %v602, 0
    %609 = vmatpush.bf16.msra.mxu0 0
    %610 = vmatpush.bf16.msra.mxu0 0
    %611 = vmatpush.bf16.msra.mxu0 0
    %612 = vmatpush.bf16.msra.mxu0 0
    %613 = vmatpush.bf16.msra.mxu0 0
    %614 = vmatpush.bf16.msra.mxu0 0
    %615 = vmatpush.bf16.msra.mxu0 0
    %616 = vmatpush.bf16.msra.mxu0 %v604
    %617 = vmatmul.bf16.gmra.mxu0 %v607
    %v618 = vpop.f32.mrf.mxu0
    %v619 = vadd.f32 0.0, %v618
    %v620 = vpop.f32.mrf.mxu0
    %v621 = vadd.f32 0.0, %v620
    %622 = vdwg.mxu0
    %v625 = vunpack.c.l.b16 %v592
    %v626 = vunpack.c.l.b16 %v593
    %v627 = vpack.c.b16 %v626, %v625
    %v629 = vsel %vm410, %v627, 0
    %631 = vmatpush.bf16.msra.mxu0 0
    %632 = vmatpush.bf16.msra.mxu0 0
    %633 = vmatpush.bf16.msra.mxu0 0
    %634 = vmatpush.bf16.msra.mxu0 0
    %635 = vmatpush.bf16.msra.mxu0 0
    %636 = vmatpush.bf16.msra.mxu0 0
    %637 = vmatpush.bf16.msra.mxu0 0
    %638 = vmatpush.bf16.msra.mxu0 %v604
    %639 = vmatmul.bf16.gmra.mxu0 %v629
    %v640 = vpop.f32.mrf.mxu0
    %v641 = vadd.f32 0.0, %v640
    %v642 = vpop.f32.mrf.mxu0
    %v643 = vadd.f32 0.0, %v642
    %644 = vdwg.mxu0
    %v647 = vunpack.c.l.b16 %v594
    %v648 = vunpack.c.l.b16 %v595
    %v649 = vpack.c.b16 %v648, %v647
    %650 = vrot.lane.b32.xlu0 %v435, 32
    %v651 = vpop.permute.xlu0 %650
    %v654 = vsel %vm410, %v649, 0
    %656 = vmatpush.bf16.msra.mxu0 0
    %657 = vmatpush.bf16.msra.mxu0 0
    %658 = vmatpush.bf16.msra.mxu0 0
    %659 = vmatpush.bf16.msra.mxu0 0
    %660 = vmatpush.bf16.msra.mxu0 0
    %661 = vmatpush.bf16.msra.mxu0 0
    %662 = vmatpush.bf16.msra.mxu0 0
    %663 = vmatpush.bf16.msra.mxu0 %v651
    %664 = vmatmul.bf16.gmra.mxu0 %v654
    %v665 = vpop.f32.mrf.mxu0
    %v666 = vadd.f32 0.0, %v665
    %v667 = vpop.f32.mrf.mxu0
    %v668 = vadd.f32 0.0, %v667
    %669 = vdwg.mxu0
    %v672 = vunpack.c.l.b16 %v596
    %v673 = vunpack.c.l.b16 %v597
    %v674 = vpack.c.b16 %v673, %v672
    %v676 = vsel %vm410, %v674, 0
    %678 = vmatpush.bf16.msra.mxu0 0
    %679 = vmatpush.bf16.msra.mxu0 0
    %680 = vmatpush.bf16.msra.mxu0 0
    %681 = vmatpush.bf16.msra.mxu0 0
    %682 = vmatpush.bf16.msra.mxu0 0
    %683 = vmatpush.bf16.msra.mxu0 0
    %684 = vmatpush.bf16.msra.mxu0 0
    %685 = vmatpush.bf16.msra.mxu0 %v651
    %686 = vmatmul.bf16.gmra.mxu0 %v676
    %v687 = vpop.f32.mrf.mxu0
    %v688 = vadd.f32 0.0, %v687
    %v689 = vpop.f32.mrf.mxu0
    %v690 = vadd.f32 0.0, %v689
    %691 = vdwg.mxu0
    %694 = vrot.lane.b32.xlu0 %v641, 16
    %v695 = vpop.permute.xlu0 %694
    %696 = vrot.lane.b32.xlu0 %v643, 16
    %v697 = vpop.permute.xlu0 %696
    %702 = vrot.lane.b32.xlu0 %v666, 32
    %v703 = vpop.permute.xlu0 %702
    %704 = vrot.lane.b32.xlu0 %v668, 32
    %v705 = vpop.permute.xlu0 %704
    %710 = vrot.lane.b32.xlu0 %v688, 48
    %v711 = vpop.permute.xlu0 %710
    %712 = vrot.lane.b32.xlu0 %v690, 48
    %v713 = vpop.permute.xlu0 %712
    %v716 = vsel %vm410, %v619, %v695
    %v717 = vsel %vm410, %v621, %v697
    %vm718 = vcmask 261120
    %v719 = vsel %vm718, %v716, %v703
    %v720 = vsel %vm718, %v717, %v705
    %vm721 = vcmask 392192
    %v722 = vsel %vm721, %v719, %v711
    %v723 = vsel %vm721, %v720, %v713
    %v724 = vpack.c.bf16 %v723, %v722
    %v725 = vld [vmem:[%s9] sm:$0xf]
    %v726 = vld [vmem:[%s9 + $0x4] sm:$0xf]
    %v727 = vld [vmem:[%s9 + $0x8] sm:$0xf]
    %v728 = vld [vmem:[%s9 + $0xc] sm:$0xf]
    %v729 = vld [vmem:[%s9 + $0x10] sm:$0xf]
    %v730 = vld [vmem:[%s9 + $0x14] sm:$0xf]
    %v731 = vld [vmem:[%s9 + $0x18] sm:$0xf]
    %v732 = vld [vmem:[%s9 + $0x1c] sm:$0xf]
    %v741 = vunpack.c.l.b16 %v725
    %v742 = vunpack.c.l.b16 %v726
    %v743 = vunpack.c.l.b16 %v727
    %v744 = vunpack.c.l.b16 %v728
    %v745 = vunpack.c.l.b16 %v729
    %v746 = vunpack.c.l.b16 %v730
    %v747 = vunpack.c.l.b16 %v731
    %v748 = vunpack.c.l.b16 %v732
    %v749 = vpack.c.b16 %v742, %v741
    %v750 = vpack.c.b16 %v744, %v743
    %v751 = vpack.c.b16 %v746, %v745
    %v752 = vpack.c.b16 %v748, %v747
    %v758 = vsel %vm143, %v724, 0
    %760 = vmatpush.bf16.msra.mxu0 0
    %761 = vmatpush.bf16.msra.mxu0 0
    %762 = vmatpush.bf16.msra.mxu0 0
    %763 = vmatpush.bf16.msra.mxu0 0
    %764 = vmatpush.bf16.msra.mxu0 %v752
    %765 = vmatpush.bf16.msra.mxu0 %v751
    %766 = vmatpush.bf16.msra.mxu0 %v750
    %767 = vmatpush.bf16.msra.mxu0 %v749
    %768 = vmatmul.bf16.gmra.mxu0 %v758
    %v769 = vpop.f32.mrf.mxu0
    %v770 = vadd.f32 0.0, %v769
    %v771 = vpop.f32.mrf.mxu0
    %v772 = vadd.f32 0.0, %v771
    %773 = vdwg.mxu0
    %v774 = vadd.f32 %v136, %v770
    %v775 = vadd.f32 %v137, %v772
    %v776 = vld [vmem:[%s7] sm:$0x1]
    %v777 = vmul.f32 %v774, %v774
    %v778 = vmul.f32 %v775, %v775
    %v779 = vsel %vm143, %v777, 0.0
    %780 = vadd.xlane.f32.xlu0 %v779
    %v781 = vpop.xlane.xlu0 %780
    %v782 = vsel %vm143, %v778, 0.0
    %783 = vadd.xlane.f32.xlu0 %v782
    %v784 = vpop.xlane.xlu0 %783
    %v785 = vmul.f32 %v781, %v156
    %v786 = vmul.f32 %v784, %v156
    %v787 = vadd.f32 %v785, 1e-06
    %v788 = vadd.f32 %v786, 1e-06
    %v789 = vrsqrt.pop %v787
    %v790 = vmul.f32 %v789, %v787
    %v791 = vmul.f32 %v790, %v789
    %v792 = vmul.f32 0.5, %v791
    %v793 = vsub.f32 1.5, %v792
    %v794 = vmul.f32 %v789, %v793
    %vm795 = vweird.f32 %v787
    %vm796 = vweird.f32 %v789
    %vm797 = vmor %vm795, %vm796
    %v798 = vsel %vm797, %v789, %v794
    %v799 = vrsqrt.pop %v788
    %v800 = vmul.f32 %v799, %v788
    %v801 = vmul.f32 %v800, %v799
    %v802 = vmul.f32 0.5, %v801
    %v803 = vsub.f32 1.5, %v802
    %v804 = vmul.f32 %v799, %v803
    %vm805 = vweird.f32 %v788
    %vm806 = vweird.f32 %v799
    %vm807 = vmor %vm805, %vm806
    %v808 = vsel %vm807, %v799, %v804
    %v809 = vmul.f32 %v774, %v798
    %v810 = vmul.f32 %v775, %v808
    %v812 = vperm.slane %v776, 0
    %v814 = vmul.f32 %v809, %v812
    %v815 = vmul.f32 %v810, %v812
    %v816 = vpack.c.bf16 %v815, %v814
    %v817 = vld [vmem:[%s10] sm:$0xff]
    %v818 = vld [vmem:[%s10 + $0x8] sm:$0xff]
    %v819 = vld [vmem:[%s10 + $0x10] sm:$0xff]
    %v820 = vld [vmem:[%s10 + $0x18] sm:$0xff]
    %v821 = vld [vmem:[%s10 + $0x20] sm:$0xff]
    %v822 = vld [vmem:[%s10 + $0x28] sm:$0xff]
    %v823 = vld [vmem:[%s10 + $0x30] sm:$0xff]
    %v824 = vld [vmem:[%s10 + $0x38] sm:$0xff]
    %v833 = vunpack.c.l.b16 %v817
    %v834 = vunpack.c.h.b16 %v817
    %v835 = vunpack.c.l.b16 %v818
    %v836 = vunpack.c.h.b16 %v818
    %v837 = vunpack.c.l.b16 %v819
    %v838 = vunpack.c.h.b16 %v819
    %v839 = vunpack.c.l.b16 %v820
    %v840 = vunpack.c.h.b16 %v820
    %v841 = vunpack.c.l.b16 %v821
    %v842 = vunpack.c.h.b16 %v821
    %v843 = vunpack.c.l.b16 %v822
    %v844 = vunpack.c.h.b16 %v822
    %v845 = vunpack.c.l.b16 %v823
    %v846 = vunpack.c.h.b16 %v823
    %v847 = vunpack.c.l.b16 %v824
    %v848 = vunpack.c.h.b16 %v824
    %v849 = vpack.c.b16 %v835, %v833
    %v850 = vpack.c.b16 %v836, %v834
    %v851 = vpack.c.b16 %v839, %v837
    %v852 = vpack.c.b16 %v840, %v838
    %v853 = vpack.c.b16 %v843, %v841
    %v854 = vpack.c.b16 %v844, %v842
    %v855 = vpack.c.b16 %v847, %v845
    %v856 = vpack.c.b16 %v848, %v846
    %v866 = vsel %vm143, %v816, 0
    %868 = vmatpush.bf16.msra.mxu0 0
    %869 = vmatpush.bf16.msra.mxu0 0
    %870 = vmatpush.bf16.msra.mxu0 0
    %871 = vmatpush.bf16.msra.mxu0 0
    %872 = vmatpush.bf16.msra.mxu0 %v855
    %873 = vmatpush.bf16.msra.mxu0 %v853
    %874 = vmatpush.bf16.msra.mxu0 %v851
    %875 = vmatpush.bf16.msra.mxu0 %v849
    %876 = vmatmul.bf16.gmra.mxu0 %v866
    %v877 = vpop.f32.mrf.mxu0
    %v878 = vadd.f32 0.0, %v877
    %v879 = vpop.f32.mrf.mxu0
    %v880 = vadd.f32 0.0, %v879
    %881 = vdwg.mxu0
    %882 = vmatpush.bf16.msra.mxu0 0
    %883 = vmatpush.bf16.msra.mxu0 0
    %884 = vmatpush.bf16.msra.mxu0 0
    %885 = vmatpush.bf16.msra.mxu0 0
    %886 = vmatpush.bf16.msra.mxu0 %v856
    %887 = vmatpush.bf16.msra.mxu0 %v854
    %888 = vmatpush.bf16.msra.mxu0 %v852
    %889 = vmatpush.bf16.msra.mxu0 %v850
    %890 = vmatmul.bf16.gmra.mxu0 %v866
    %v891 = vpop.f32.mrf.mxu0
    %v892 = vadd.f32 0.0, %v891
    %v893 = vpop.f32.mrf.mxu0
    %v894 = vadd.f32 0.0, %v893
    %895 = vdwg.mxu0
    %v896 = vxor.u32 %v878, 2147483648
    %v897 = vxor.u32 %v880, 2147483648
    %v898 = vmul.f32 %v896, 1.442695
    %v899 = vpow.pop %v898
    %v900 = vmul.f32 %v897, 1.442695
    %v901 = vpow.pop %v900
    %v902 = vadd.f32 %v899, 1.0
    %v903 = vadd.f32 %v901, 1.0
    %v904 = vrcp.pop %v902
    %v905 = vmul.f32 %v902, %v904
    %v906 = vsub.f32 1.0, %v905
    %v907 = vmul.f32 %v904, %v906
    %v908 = vadd.f32 %v904, %v907
    %vm909 = vweird.f32 %v902
    %vm910 = vweird.f32 %v904
    %vm911 = vmor %vm909, %vm910
    %v912 = vsel %vm911, %v904, %v908
    %v913 = vand.u32 2147483647, %v902
    %vm914 = vcmp.eq.f32.partialorder %v913, 8.507059e+37
    %v915 = vand.u32 %v902, 2147483648
    %v916 = vor.u32 1.1754944e-38, %v915
    %v917 = vsel %vm914, %v916, %v912
    %v918 = vmul.f32 1.0, %v917
    %v919 = vrcp.pop %v903
    %v920 = vmul.f32 %v903, %v919
    %v921 = vsub.f32 1.0, %v920
    %v922 = vmul.f32 %v919, %v921
    %v923 = vadd.f32 %v919, %v922
    %vm924 = vweird.f32 %v903
    %vm925 = vweird.f32 %v919
    %vm926 = vmor %vm924, %vm925
    %v927 = vsel %vm926, %v919, %v923
    %v928 = vand.u32 2147483647, %v903
    %vm929 = vcmp.eq.f32.partialorder %v928, 8.507059e+37
    %v930 = vand.u32 %v903, 2147483648
    %v931 = vor.u32 1.1754944e-38, %v930
    %v932 = vsel %vm929, %v931, %v927
    %v933 = vmul.f32 1.0, %v932
    %v934 = vmul.f32 %v878, %v918
    %v935 = vmul.f32 %v880, %v933
    %v936 = vmul.f32 %v934, %v892
    %v937 = vmul.f32 %v935, %v894
    %v938 = vpack.c.bf16 %v937, %v936
    %v939 = vld [vmem:[%s11] sm:$0xf]
    %v940 = vld [vmem:[%s11 + $0x4] sm:$0xf]
    %v941 = vld [vmem:[%s11 + $0x8] sm:$0xf]
    %v942 = vld [vmem:[%s11 + $0xc] sm:$0xf]
    %v943 = vld [vmem:[%s11 + $0x10] sm:$0xf]
    %v944 = vld [vmem:[%s11 + $0x14] sm:$0xf]
    %v945 = vld [vmem:[%s11 + $0x18] sm:$0xf]
    %v946 = vld [vmem:[%s11 + $0x1c] sm:$0xf]
    %v947 = vld [vmem:[%s11 + $0x20] sm:$0xf]
    %v948 = vld [vmem:[%s11 + $0x24] sm:$0xf]
    %v949 = vld [vmem:[%s11 + $0x28] sm:$0xf]
    %v950 = vld [vmem:[%s11 + $0x2c] sm:$0xf]
    %v951 = vld [vmem:[%s11 + $0x30] sm:$0xf]
    %v952 = vld [vmem:[%s11 + $0x34] sm:$0xf]
    %v953 = vld [vmem:[%s11 + $0x38] sm:$0xf]
    %v954 = vld [vmem:[%s11 + $0x3c] sm:$0xf]
    %v971 = vunpack.c.l.b16 %v939
    %v972 = vunpack.c.l.b16 %v940
    %v973 = vunpack.c.l.b16 %v941
    %v974 = vunpack.c.l.b16 %v942
    %v975 = vunpack.c.l.b16 %v943
    %v976 = vunpack.c.l.b16 %v944
    %v977 = vunpack.c.l.b16 %v945
    %v978 = vunpack.c.l.b16 %v946
    %v979 = vunpack.c.l.b16 %v947
    %v980 = vunpack.c.l.b16 %v948
    %v981 = vunpack.c.l.b16 %v949
    %v982 = vunpack.c.l.b16 %v950
    %v983 = vunpack.c.l.b16 %v951
    %v984 = vunpack.c.l.b16 %v952
    %v985 = vunpack.c.l.b16 %v953
    %v986 = vunpack.c.l.b16 %v954
    %v987 = vpack.c.b16 %v972, %v971
    %v988 = vpack.c.b16 %v974, %v973
    %v989 = vpack.c.b16 %v976, %v975
    %v990 = vpack.c.b16 %v978, %v977
    %v991 = vpack.c.b16 %v980, %v979
    %v992 = vpack.c.b16 %v982, %v981
    %v993 = vpack.c.b16 %v984, %v983
    %v994 = vpack.c.b16 %v986, %v985
    %1003 = vmatpush.bf16.msra.mxu0 %v994
    %1004 = vmatpush.bf16.msra.mxu0 %v993
    %1005 = vmatpush.bf16.msra.mxu0 %v992
    %1006 = vmatpush.bf16.msra.mxu0 %v991
    %1007 = vmatpush.bf16.msra.mxu0 %v990
    %1008 = vmatpush.bf16.msra.mxu0 %v989
    %1009 = vmatpush.bf16.msra.mxu0 %v988
    %1010 = vmatpush.bf16.msra.mxu0 %v987
    %1011 = vmatmul.bf16.gmra.mxu0 %v938
    %v1012 = vpop.f32.mrf.mxu0
    %v1013 = vadd.f32 0.0, %v1012
    %v1014 = vpop.f32.mrf.mxu0
    %v1015 = vadd.f32 0.0, %v1014
    %1016 = vdwg.mxu0
    %v1017 = vadd.f32 %v774, %v1013
    %v1018 = vadd.f32 %v775, %v1015
    %1020 = vrot.lane.b32.xlu0 %v1018, 64
    %v1021 = vpop.permute.xlu0 %1020
    %v1023 = vsel %vm143, %v1017, %v1021
    %1024 = vst [vmem:[%s12] sm:$0xff] %v1023
    // Predicated region
    $region74: #{decoder_layer_emb_forward.1} parent=1 // pred_check
      _
    $region75: #{decoder_layer_emb_forward.1} parent=1 // pred_check_branch
      %1026 = sbr.rel (0) target = $region77
    $region76: #{decoder_layer_emb_forward.1} parent=1 // pred_region
      _
    $region77: #{decoder_layer_emb_forward.1} parent=1 // pred_fallthru
      _
    // Predicated region
    $region78: #{decoder_layer_emb_forward.1} parent=1 // pred_check
      _
    $region79: #{decoder_layer_emb_forward.1} parent=1 // pred_check_branch
      %1028 = sbr.rel (0) target = $region81
    $region80: #{decoder_layer_emb_forward.1} parent=1 // pred_region
      _
    $region81: #{decoder_layer_emb_forward.1} parent=1 // pred_fallthru
      _
    %1029 = vsyncpa [#allocation3], 1
    %1030 = vsyncpa [#allocation5], 1
    %1031 = vsyncpa [#allocation8], 1
    %1032 = vsyncpa [#allocation11], 1

</llo_original>
